<compile_context>
chip_gen: v5e
topology: v5e:2x2
jax: 0.10.0
libtpu: 0.0.40
codegen_flags: <defaults>
</compile_context>

<pallas_src>
import functools

import jax
import jax.numpy as jnp
from jax.experimental import pallas as pl
from jax.experimental.pallas import tpu as pltpu


def _round_up(x: int, m: int) -> int:
    return ((x + m - 1) // m) * m


def _poly_cutoff_kernel(dist_ref, out_ref, *, cutoff: float, order: int):
    p = float(order)
    # Compile-time Python-float coefficients (weak-typed -> keep input dtype).
    c0 = -0.5 * (p + 1.0) * (p + 2.0)
    c1 = p * (p + 2.0)
    c2 = -0.5 * p * (p + 1.0)

    d = dist_ref[...]
    x = d * (1.0 / cutoff)                 # d / cutoff

    # x^order via repeated multiply (exact for integer order, VPU only).
    if order <= 0:
        xp = jnp.ones_like(x)
    else:
        xp = x
        for _ in range(order - 1):
            xp = xp * x

    # f = 1 + x^p * (c0 + x*(c1 + c2*x))   (Horner on the tail)
    out_ref[...] = 1.0 + xp * (c0 + x * (c1 + c2 * x))


def polynomial_cutoff(dist: jax.Array, cutoff: float, order: int = 3,
                      *, target_block_rows: int = 2048,
                      default_lanes: int = 512) -> jax.Array:
    """Elementwise polynomial cutoff for `dist` of any shape/size."""
    orig_shape = dist.shape
    orig_dtype = dist.dtype
    total = int(dist.size)
    if total == 0:
        return dist

    # Sublane granule for this dtype: 8 (f32), 16 (bf16), 32 (8-bit).
    itemsize = max(1, jnp.dtype(orig_dtype).itemsize)
    sub = 8 * max(1, 4 // itemsize)

    flat = dist.reshape(-1)

    # Pad-free fast path: pick a lane width (multiple of 128) dividing `total`
    # so the reshape is a free contiguous re-view and no extra HBM pass is
    # spent on padding / slicing this memory-bound op.
    lanes = None
    for cand in (512, 256, 128):
        if total % cand == 0:
            lanes = cand
            rows = total // cand
            pad = 0
            break

    if lanes is None:
        lanes = default_lanes
        rows = _round_up(max(pl.cdiv(total, lanes), 1), sub)
        pad = rows * lanes - total
        flat = jnp.pad(flat, (0, pad))

    # Cap block_rows at ~half the (granule-rounded) rows so the grid stays >= 2
    # whenever there is enough data (v7x megacore); target ~4 MiB f32 tiles for
    # HBM-bandwidth efficiency.
    half_rows = _round_up(max(pl.cdiv(rows, 2), 1), sub)
    block_rows = max(sub, min(int(target_block_rows), half_rows))
    if block_rows >= rows:
        # Single full-extent block (legal even when rows is not granule-aligned).
        block_rows = rows
    grid_len = pl.cdiv(rows, block_rows)   # partial tail block handled by Pallas

    x2d = flat.reshape(rows, lanes)

    kernel = functools.partial(_poly_cutoff_kernel,
                               cutoff=float(cutoff), order=int(order))

    out2d = pl.pallas_call(
        kernel,
        out_shape=jax.ShapeDtypeStruct((rows, lanes), orig_dtype),
        grid_spec=pltpu.PrefetchScalarGridSpec(
            num_scalar_prefetch=0,
            grid=(grid_len,),
            in_specs=[pl.BlockSpec((block_rows, lanes), lambda i: (i, 0))],
            out_specs=pl.BlockSpec((block_rows, lanes), lambda i: (i, 0)),
        ),
        compiler_params=pltpu.CompilerParams(
            dimension_semantics=("parallel",),
            # Double-buffered in+out tiles (4 * ~4 MiB = 16 MiB) + headroom;
            # stays under v7x's 64 MiB physical VMEM per TensorCore.
            vmem_limit_bytes=48 * 1024 * 1024,
        ),
    )(x2d)

    out = out2d.reshape(-1)
    if pad:
        out = out[:total]
    return out.reshape(orig_shape)


def polynomial_cutoff_ref(dist: jax.Array, cutoff: float, order: int = 3) -> jax.Array:
    p = float(order)
    x = dist / cutoff
    return (1.0
            - 0.5 * (p + 1.0) * (p + 2.0) * x ** order
            + p * (p + 2.0) * x ** (order + 1)
            - 0.5 * p * (p + 1.0) * x ** (order + 2))


if __name__ == "__main__":
    # PolynomialCutoff(cutoff=5.0, order=3) has no learnable parameters.
    cutoff = 5.0
    order = 3

    key = jax.random.PRNGKey(0)
    k1, k2, k3 = jax.random.split(key, 3)

    # (8, 300): non-128 last dim -> flatten + pad path.
    # (4000,):  1-D input, also pad path with a short tail.
    # (16, 512): divisible by 512 -> pad-free fast path with a partial row tile.
    dist_a = jax.random.uniform(k1, (8, 300), dtype=jnp.float32,
                                minval=0.0, maxval=1.2 * cutoff)
    dist_b = jax.random.uniform(k2, (4000,), dtype=jnp.float32,
                                minval=0.0, maxval=cutoff)
    dist_c = jax.random.uniform(k3, (16, 512), dtype=jnp.float32,
                                minval=0.0, maxval=1.5 * cutoff)

    out_a = jax.block_until_ready(polynomial_cutoff(dist_a, cutoff, order))
    out_b = jax.block_until_ready(polynomial_cutoff(dist_b, cutoff, order))
    out_c = jax.block_until_ready(polynomial_cutoff(dist_c, cutoff, order))

    ref_a = polynomial_cutoff_ref(dist_a, cutoff, order)
    ref_b = polynomial_cutoff_ref(dist_b, cutoff, order)
    ref_c = polynomial_cutoff_ref(dist_c, cutoff, order)

    assert out_a.shape == dist_a.shape and out_a.dtype == dist_a.dtype
    assert out_b.shape == dist_b.shape and out_b.dtype == dist_b.dtype
    assert out_c.shape == dist_c.shape and out_c.dtype == dist_c.dtype
    assert jnp.allclose(out_a, ref_a, atol=1e-5, rtol=1e-5), "mismatch vs reference (a)"
    assert jnp.allclose(out_b, ref_b, atol=1e-5, rtol=1e-5), "mismatch vs reference (b)"
    assert jnp.allclose(out_c, ref_c, atol=1e-5, rtol=1e-5), "mismatch vs reference (c)"

    print("KERNEL_OK")
</pallas_src>

<mosaic_0001>
module attributes {stable_mosaic.version = 11 : i64} {
  func.func @_poly_cutoff_kernel(%arg0: i32, %arg1: memref<8x512xf32, #tpu.memory_space<vmem>>, %arg2: memref<8x512xf32, #tpu.memory_space<vmem>>) attributes {dimension_semantics = [#tpu.dimension_semantics<parallel>], iteration_bounds = array<i64: 1>, scalar_prefetch = 0 : i64, scratch_operands = 0 : i64, tpu.core_type = #tpu.core_type<tc>, window_params = [{transform_indices = @transform_0, window_bounds = array<i64: 8, 512>}, {transform_indices = @transform_1, window_bounds = array<i64: 8, 512>}]} {
    %c0 = arith.constant 0 : index
    %c0_0 = arith.constant 0 : index
    %0 = vector.load %arg1[%c0, %c0_0] : memref<8x512xf32, #tpu.memory_space<vmem>>, vector<8x512xf32>
    %cst = arith.constant 2.000000e-01 : f32
    %1 = vector.broadcast %cst : f32 to vector<8x512xf32>
    %2 = arith.mulf %0, %1 : vector<8x512xf32>
    %3 = arith.mulf %2, %2 : vector<8x512xf32>
    %4 = arith.mulf %3, %2 : vector<8x512xf32>
    %cst_1 = arith.constant -6.000000e+00 : f32
    %5 = vector.broadcast %cst_1 : f32 to vector<8x512xf32>
    %6 = arith.mulf %5, %2 : vector<8x512xf32>
    %cst_2 = arith.constant 1.500000e+01 : f32
    %7 = vector.broadcast %cst_2 : f32 to vector<8x512xf32>
    %8 = arith.addf %7, %6 : vector<8x512xf32>
    %9 = arith.mulf %2, %8 : vector<8x512xf32>
    %cst_3 = arith.constant -1.000000e+01 : f32
    %10 = vector.broadcast %cst_3 : f32 to vector<8x512xf32>
    %11 = arith.addf %10, %9 : vector<8x512xf32>
    %12 = arith.mulf %4, %11 : vector<8x512xf32>
    %cst_4 = arith.constant 1.000000e+00 : f32
    %13 = vector.broadcast %cst_4 : f32 to vector<8x512xf32>
    %14 = arith.addf %13, %12 : vector<8x512xf32>
    %c0_5 = arith.constant 0 : index
    %c0_6 = arith.constant 0 : index
    %15 = vector.load %arg2[%c0_5, %c0_6] : memref<8x512xf32, #tpu.memory_space<vmem>>, vector<8x512xf32>
    tpu.vector_store %arg2[%c0_5, %c0_6], %14 {strides = array<i32>} : memref<8x512xf32, #tpu.memory_space<vmem>>, vector<8x512xf32>,
    return
  }
  func.func @transform_0(%arg0: i32) -> (i32, i32) {
    %c0_i32 = arith.constant 0 : i32
    %c0_i32_0 = arith.constant 0 : i32
    return %arg0, %c0_i32 : i32, i32
  }
  func.func @transform_1(%arg0: i32) -> (i32, i32) {
    %c0_i32 = arith.constant 0 : i32
    %c0_i32_0 = arith.constant 0 : i32
    return %arg0, %c0_i32 : i32, i32
  }
}

</mosaic_0001>

<llo_original>
// kernel: tpu_custom_call.1
$region0: #{tpu_custom_call.1}
  #allocation0 [shape = 'u32[]', space=smem, size = 0x4, offset = 0x4, fixed_abs, tag = 'smem constant byte address 0x4 - core index']
  #allocation1 [shape = 'u32[72,128]{1,0:T(1,128)}', space=vmem, size = 0x9000, scoped, tag = 'internal scratch']
  %s0 = inlined_call_operand.hbm [shape: f32[8,512], index: 0, kind: input, shape index: {}]
  %s1 = inlined_call_operand.hbm [shape: f32[8,512], index: 1, kind: output, shape index: {}]
  %s2 = sld [smem:[#allocation0]]
  $region18: #{tpu_custom_call.1} parent=0
    _
  %s4 = ssub.s32 1, %s2
  %s5 = scalar_select 0, %s4, %s2
  $region1: #{tpu_custom_call.1} parent=0
    #allocation2 [shape = 'u8[16384]{0}', space=vmem, size = 0x4000, scoped, tag = 'input window, operand 0, single buffered']
    #allocation3 [shape = 's32[1]{0}', space=sflag, size = 0x4, scoped, tag = 'scoped memory for tpu_custom_call.1']
    #allocation4 [shape = 's32[1]{0}', space=sflag, size = 0x4, scoped, tag = 'scoped memory for tpu_custom_call.1']
    #allocation5 [shape = 'u8[16384]{0}', space=vmem, size = 0x4000, scoped, tag = 'output window, operand 0, single buffered']
    %6 = vsyncpa [#allocation3], 0
    %7 = vsyncpa [#allocation4], 0
    // Predicated region
    $region2: #{tpu_custom_call.1} parent=1 // pred_check
      _
    $region3: #{tpu_custom_call.1} parent=1 // pred_check_branch
      %9 = sbr.rel (0) target = $region5
    $region4: #{tpu_custom_call.1} parent=1 // pred_region
      %11 = vsyncadd [#allocation3], 0
      %s13 = sshll.u32 %s0, 4
      %s14 = int_to_ptr.hbm [resolvable:$true] %s13
      %s15 = sshll.u32 [#allocation2], 4
      %s16 = int_to_ptr.vmem [resolvable:$true] %s15
      %18 = dma.hbm_to_vmem [thread:$0]  %s14, 512, %s16, [#allocation3]
    $region5: #{tpu_custom_call.1} parent=1 // pred_fallthru
      _
    // Predicated region
    $region6: #{tpu_custom_call.1} parent=1 // pred_check
      _
    $region7: #{tpu_custom_call.1} parent=1 // pred_check_branch
      %20 = sbr.rel (0) target = $region9
    $region8: #{tpu_custom_call.1} parent=1 // pred_region
      %22 = dma.done [#allocation3], 512
    $region9: #{tpu_custom_call.1} parent=1 // pred_fallthru
      _
    %v23 = vld [vmem:[#allocation2] sm:$0xff]
    %v24 = vld [vmem:[#allocation2 + $0x8] sm:$0xff]
    %v25 = vld [vmem:[#allocation2 + $0x10] sm:$0xff]
    %v26 = vld [vmem:[#allocation2 + $0x18] sm:$0xff]
    %v27 = vmul.f32 %v23, 0.2
    %v28 = vmul.f32 %v24, 0.2
    %v29 = vmul.f32 %v25, 0.2
    %v30 = vmul.f32 %v26, 0.2
    %v31 = vmul.f32 %v27, %v27
    %v32 = vmul.f32 %v28, %v28
    %v33 = vmul.f32 %v29, %v29
    %v34 = vmul.f32 %v30, %v30
    %v35 = vmul.f32 %v31, %v27
    %v36 = vmul.f32 %v32, %v28
    %v37 = vmul.f32 %v33, %v29
    %v38 = vmul.f32 %v34, %v30
    %v39 = vmul.f32 %v27, -6.0
    %v40 = vmul.f32 %v28, -6.0
    %v41 = vmul.f32 %v29, -6.0
    %v42 = vmul.f32 %v30, -6.0
    %v43 = vadd.f32 %v39, 15.0
    %v44 = vadd.f32 %v40, 15.0
    %v45 = vadd.f32 %v41, 15.0
    %v46 = vadd.f32 %v42, 15.0
    %v47 = vmul.f32 %v27, %v43
    %v48 = vmul.f32 %v28, %v44
    %v49 = vmul.f32 %v29, %v45
    %v50 = vmul.f32 %v30, %v46
    %v51 = vadd.f32 %v47, -10.0
    %v52 = vadd.f32 %v48, -10.0
    %v53 = vadd.f32 %v49, -10.0
    %v54 = vadd.f32 %v50, -10.0
    %v55 = vmul.f32 %v35, %v51
    %v56 = vmul.f32 %v36, %v52
    %v57 = vmul.f32 %v37, %v53
    %v58 = vmul.f32 %v38, %v54
    %v59 = vadd.f32 %v55, 1.0
    %v60 = vadd.f32 %v56, 1.0
    %v61 = vadd.f32 %v57, 1.0
    %v62 = vadd.f32 %v58, 1.0
    %63 = vst [vmem:[#allocation5] sm:$0xff] %v59
    %64 = vst [vmem:[#allocation5 + $0x8] sm:$0xff] %v60
    %65 = vst [vmem:[#allocation5 + $0x10] sm:$0xff] %v61
    %66 = vst [vmem:[#allocation5 + $0x18] sm:$0xff] %v62
    // Predicated region
    $region10: #{tpu_custom_call.1} parent=1 // pred_check
      _
    $region11: #{tpu_custom_call.1} parent=1 // pred_check_branch
      %68 = sbr.rel (0) target = $region13
    $region12: #{tpu_custom_call.1} parent=1 // pred_region
      %70 = vsyncadd [#allocation4], 0
      %s72 = sshll.u32 [#allocation5], 4
      %s73 = int_to_ptr.vmem [resolvable:$true] %s72
      %s74 = sshll.u32 %s1, 4
      %s75 = int_to_ptr.hbm [resolvable:$true] %s74
      %77 = dma.vmem_to_hbm [thread:$0]  %s73, 512, %s75, [#allocation4]
    $region13: #{tpu_custom_call.1} parent=1 // pred_fallthru
      _
    // Predicated region
    $region14: #{tpu_custom_call.1} parent=1 // pred_check
      _
    $region15: #{tpu_custom_call.1} parent=1 // pred_check_branch
      %79 = sbr.rel (0) target = $region17
    $region16: #{tpu_custom_call.1} parent=1 // pred_region
      %81 = dma.done [#allocation4], 512
    $region17: #{tpu_custom_call.1} parent=1 // pred_fallthru
      _
    %82 = vsyncpa [#allocation3], 1
    %83 = vsyncpa [#allocation4], 1

</llo_original>
